<compile_context>
chip_gen: v5e
topology: v5e:2x2
jax: 0.10.0
libtpu: 0.0.40
codegen_flags: <defaults>
</compile_context>

<pallas_src>
import functools
import math

import jax
import jax.numpy as jnp
from jax import lax
from jax.experimental import pallas as pl
from jax.experimental.pallas import tpu as pltpu


LN_EPS = 1e-5

_LAYER_PARAM_KEYS = (
    "w_in_t", "b_in", "w_out_t", "b_out",
    "ln1_g", "ln1_b", "w1_t", "b1", "w2_t", "b2",
    "ln2_g", "ln2_b",
)


# ----------------------------- small helpers --------------------------------

def _round_up(x, m):
    return (x + m - 1) // m * m


def _choose_tile(total_samples, s_pad, target_rows=256):
    # Smallest divisor of the sample count whose flattened row count feeds the
    # MXU with >= target_rows rows (256 for v6e/v7x); falls back to the whole
    # batch for tiny inputs.
    for d in range(1, total_samples + 1):
        if total_samples % d == 0 and d * s_pad >= target_rows:
            return d
    return total_samples


def _gelu_tanh(x):
    # TODO(synk): PyTorch nn.GELU() defaults to the exact erf form; the tanh
    # approximation is used here (and in the reference) since erf has no
    # guaranteed Mosaic lowering.  Max deviation ~1e-3.
    c = math.sqrt(2.0 / math.pi)
    return 0.5 * x * (1.0 + jnp.tanh(c * (x + 0.044715 * x * x * x)))


def _layer_norm(x, gamma, beta):
    mu = jnp.mean(x, axis=-1, keepdims=True)
    xc = x - mu
    var = jnp.mean(xc * xc, axis=-1, keepdims=True)
    return xc * lax.rsqrt(var + LN_EPS) * gamma + beta


# ------------------------------ Pallas kernels ------------------------------

def _prep_kernel(xl_ref, xs_ref, wl_ref, bl_ref, cl_ref,
                 ws_ref, bs_ref, cs_ref, ol_ref, os_ref, *, s_pad):
    """1x1-conv patch embedding + cls prepend + pad-to-S_pad for both streams."""

    def embed(x, w, b, cls):
        proj = jnp.dot(x, w, preferred_element_type=jnp.float32) + b     # (P, E)
        parts = [cls, proj]
        n_pad = s_pad - 1 - proj.shape[0]
        if n_pad:
            parts.append(jnp.zeros((n_pad, proj.shape[1]), jnp.float32))
        return jnp.concatenate(parts, axis=0)                            # (S_pad, E)

    ol_ref[0] = embed(xl_ref[0], wl_ref[...], bl_ref[...], cl_ref[...])
    os_ref[0] = embed(xs_ref[0], ws_ref[...], bs_ref[...], cs_ref[...])


def _stack_kernel(x_ref, w_in_ref, b_in_ref, w_out_ref, b_out_ref,
                  ln1g_ref, ln1b_ref, w1_ref, b1_ref, w2_ref, b2_ref,
                  ln2g_ref, ln2b_ref, o_ref, x_scr,
                  *, num_heads, bt, s_pad, s_large, s_small, n_large):
    """One (batch_tile, layer) grid step of the shared transformer stack.

    The f32 residual stream (bt*s_pad, E) is carried across the layer grid
    axis in VMEM scratch; one layer's weights are streamed per grid step.
    The masked mean-pooled features are emitted only at the last layer.
    """
    l = pl.program_id(1)
    n_layers = pl.num_programs(1)

    @pl.when(l == 0)
    def _init():
        x_scr[...] = x_ref[0]

    x = x_scr[...]                                       # (bt*s_pad, E) f32
    _, e_dim = x.shape
    d_head = e_dim // num_heads
    scale = 1.0 / math.sqrt(d_head)
    tile_base = pl.program_id(0) * bt

    # ---- fused QKV projection over the whole batch tile (bf16 MXU, f32 acc)
    qkv = jnp.dot(x.astype(jnp.bfloat16), w_in_ref[0],
                  preferred_element_type=jnp.float32) + b_in_ref[0]      # (rows, 3E)

    # ---- per-sample attention; out-projection accumulated per head so no
    #      lane-axis concatenation of heads is needed.
    attn_blocks = []
    for i in range(bt):
        qkv_i = qkv[i * s_pad:(i + 1) * s_pad, :]                        # 8-row aligned
        n_valid = jnp.where(tile_base + i < n_large, s_large, s_small)
        key_ok = lax.broadcasted_iota(jnp.int32, (1, s_pad), 1) < n_valid
        acc = jnp.zeros((s_pad, e_dim), jnp.float32)
        for h in range(num_heads):
            q = (qkv_i[:, h * d_head:(h + 1) * d_head] * scale).astype(jnp.bfloat16)
            k = qkv_i[:, e_dim + h * d_head:
                      e_dim + (h + 1) * d_head].astype(jnp.bfloat16)
            v = qkv_i[:, 2 * e_dim + h * d_head:
                      2 * e_dim + (h + 1) * d_head].astype(jnp.bfloat16)
            # contract last dims -> no in-VMEM transpose of K
            s = lax.dot_general(q, k, (((1,), (1,)), ((), ())),
                                preferred_element_type=jnp.float32)      # (s_pad, s_pad)
            s = jnp.where(key_ok, s, -1e30)              # mask padded keys
            m = jnp.max(s, axis=-1, keepdims=True)
            p = jnp.exp(s - m)
            p = p * pl.reciprocal(jnp.sum(p, axis=-1, keepdims=True), approx=True)
            o_h = jnp.dot(p.astype(jnp.bfloat16), v,
                          preferred_element_type=jnp.float32)            # (s_pad, D)
            w_out_h = w_out_ref[0, h * d_head:(h + 1) * d_head, :]       # (D, E) bf16
            acc = acc + jnp.dot(o_h.astype(jnp.bfloat16), w_out_h,
                                preferred_element_type=jnp.float32)
        attn_blocks.append(acc)
    attn = attn_blocks[0] if bt == 1 else jnp.concatenate(attn_blocks, axis=0)
    attn = attn + b_out_ref[0]

    x = _layer_norm(x + attn, ln1g_ref[0], ln1b_ref[0])

    # ---- MLP over the flattened batch tile (bf16 MXU, f32 acc; GELU in f32)
    h1 = jnp.dot(x.astype(jnp.bfloat16), w1_ref[0],
                 preferred_element_type=jnp.float32) + b1_ref[0]
    h1 = _gelu_tanh(h1)
    mlp = jnp.dot(h1.astype(jnp.bfloat16), w2_ref[0],
                  preferred_element_type=jnp.float32) + b2_ref[0]
    x = _layer_norm(x + mlp, ln2g_ref[0], ln2b_ref[0])
    x_scr[...] = x
    # nn.Dropout layers are identities in eval mode.

    # ---- fused masked mean-pool, emitted once per batch tile
    @pl.when(l == n_layers - 1)
    def _finalize():
        pooled = []
        for i in range(bt):
            xi = x[i * s_pad:(i + 1) * s_pad, :]
            is_large = tile_base + i < n_large
            n_valid = jnp.where(is_large, s_large, s_small)
            inv_n = jnp.where(is_large, 1.0 / float(s_large), 1.0 / float(s_small))
            row_ok = (lax.broadcasted_iota(jnp.int32, (s_pad, 1), 0)
                      < n_valid).astype(jnp.float32)
            pooled.append(jnp.sum(xi * row_ok, axis=0, keepdims=True) * inv_n)
        o_ref[0] = pooled[0] if bt == 1 else jnp.concatenate(pooled, axis=0)


def _head_kernel(pool_l_ref, pool_s_ref, w1_ref, b1_ref, w2_ref, b2_ref, o_ref):
    feat = jnp.concatenate([pool_l_ref[...], pool_s_ref[...]], axis=-1)  # (B, 2E)
    h = jnp.dot(feat.astype(jnp.bfloat16), w1_ref[...],
                preferred_element_type=jnp.float32) + b1_ref[...]
    h = _gelu_tanh(h)
    o_ref[...] = (jnp.dot(h.astype(jnp.bfloat16), w2_ref[...],
                          preferred_element_type=jnp.float32) + b2_ref[...])


# ------------------------------ wrappers ------------------------------------

def _replicated_spec(shape):
    return pl.BlockSpec(shape, lambda b: (0,) * len(shape))


def patch_embed_prep(x_large, x_small, params, s_pad):
    """Both streams' patch embedding + cls + padding in one fused call."""
    B = x_large.shape[0]
    E = params["patch_large"]["w"].shape[0]

    def to_tokens(x):
        b, c, hh, ww = x.shape
        return x.reshape(b, c, hh * ww).transpose(0, 2, 1).astype(jnp.float32)

    xl_t = to_tokens(x_large)                 # (B, P_l, C_l)
    xs_t = to_tokens(x_small)                 # (B, P_s, C_s)

    def prep_w(p):
        w = p["w"].reshape(E, -1).T.astype(jnp.float32)   # (C, E) pre-transposed
        b = p["b"].reshape(1, E).astype(jnp.float32)
        return w, b

    wl, bl = prep_w(params["patch_large"])
    ws, bs = prep_w(params["patch_small"])
    cl = params["cls_large"].reshape(1, E).astype(jnp.float32)
    cs = params["cls_small"].reshape(1, E).astype(jnp.float32)

    return pl.pallas_call(
        functools.partial(_prep_kernel, s_pad=s_pad),
        grid=(B,),
        in_specs=[
            pl.BlockSpec((1,) + xl_t.shape[1:], lambda b: (b, 0, 0)),
            pl.BlockSpec((1,) + xs_t.shape[1:], lambda b: (b, 0, 0)),
            _replicated_spec(wl.shape), _replicated_spec(bl.shape),
            _replicated_spec(cl.shape),
            _replicated_spec(ws.shape), _replicated_spec(bs.shape),
            _replicated_spec(cs.shape),
        ],
        out_specs=(
            pl.BlockSpec((1, s_pad, E), lambda b: (b, 0, 0)),
            pl.BlockSpec((1, s_pad, E), lambda b: (b, 0, 0)),
        ),
        out_shape=(
            jax.ShapeDtypeStruct((B, s_pad, E), jnp.float32),
            jax.ShapeDtypeStruct((B, s_pad, E), jnp.float32),
        ),
        compiler_params=pltpu.CompilerParams(dimension_semantics=("parallel",)),
    )(xl_t, xs_t, wl, bl, cl, ws, bs, cs)


def transformer_stack(tok_l, tok_s, blocks, num_heads, s_large, s_small):
    """Shared transformer stack for both streams in a single pallas_call."""
    B, s_pad, E = tok_l.shape
    total = 2 * B
    L = blocks["w_in_t"].shape[0]
    bt = _choose_tile(total, s_pad)
    num_tiles = total // bt

    # combined batch [large_0..large_{B-1}, small_0..small_{B-1}], flattened
    # per-tile so all big matmuls run on (bt*s_pad, E) lane/row-dense slabs.
    tokens = jnp.concatenate([tok_l, tok_s], axis=0).reshape(num_tiles, bt * s_pad, E)

    params_list = [blocks[k] for k in _LAYER_PARAM_KEYS]
    weight_specs = [
        pl.BlockSpec((1,) + p.shape[1:], lambda i, l: (l, 0, 0)) for p in params_list
    ]

    kernel = functools.partial(
        _stack_kernel, num_heads=num_heads, bt=bt, s_pad=s_pad,
        s_large=s_large, s_small=s_small, n_large=B)

    pooled = pl.pallas_call(
        kernel,
        grid=(num_tiles, L),
        in_specs=[pl.BlockSpec((1, bt * s_pad, E), lambda i, l: (i, 0, 0))]
        + weight_specs,
        out_specs=pl.BlockSpec((1, bt, E), lambda i, l: (i, 0, 0)),
        out_shape=jax.ShapeDtypeStruct((num_tiles, bt, E), jnp.float32),
        scratch_shapes=[pltpu.VMEM((bt * s_pad, E), jnp.float32)],
        compiler_params=pltpu.CompilerParams(
            dimension_semantics=("parallel", "arbitrary"),
            vmem_limit_bytes=64 * 1024 * 1024),
    )(tokens, *params_list)
    return pooled.reshape(total, E)


def mlp_head(pooled_large, pooled_small, head):
    B = pooled_large.shape[0]
    n_classes = head["w2_t"].shape[-1]
    return pl.pallas_call(
        _head_kernel,
        out_shape=jax.ShapeDtypeStruct((B, n_classes), jnp.float32),
    )(pooled_large, pooled_small,
      head["w1_t"], head["b1"], head["w2_t"], head["b2"])


def cross_vit_forward(x_large, x_small, params, num_heads):
    B, _, h_l, w_l = x_large.shape
    _, _, h_s, w_s = x_small.shape
    s_large = h_l * w_l + 1
    s_small = h_s * w_s + 1
    s_pad = _round_up(max(s_large, s_small), 8)

    tok_l, tok_s = patch_embed_prep(x_large, x_small, params, s_pad)
    pooled = transformer_stack(tok_l, tok_s, params["blocks"], num_heads,
                               s_large, s_small)                         # (2B, E)
    return mlp_head(pooled[:B], pooled[B:], params["head"])


# ------------------------------ parameters ----------------------------------

def init_params(key, *, in_ch_large, in_ch_small, embed_dim, num_heads,
                num_classes, num_layers, mlp_dim):
    del num_heads
    E, M, L = embed_dim, mlp_dim, num_layers
    keys = iter(jax.random.split(key, 32))

    def rnd(shape, scale=0.05):
        return jax.random.normal(next(keys), shape, jnp.float32) * scale

    def rnd_bf16(shape):
        # MXU operand weights live in bf16 (f32 accumulation in-kernel).
        return rnd(shape).astype(jnp.bfloat16)

    return {
        # conv1x1 weights kept in PyTorch layout (E, C, 1, 1)
        "patch_large": {"w": rnd((E, in_ch_large, 1, 1)), "b": rnd((E,))},
        "patch_small": {"w": rnd((E, in_ch_small, 1, 1)), "b": rnd((E,))},
        "cls_large": jnp.zeros((1, 1, E), jnp.float32),   # matches nn.Parameter(zeros)
        "cls_small": jnp.zeros((1, 1, E), jnp.float32),
        "blocks": {
            # projection weights pre-transposed to (in, out), stacked over layers
            "w_in_t": rnd_bf16((L, E, 3 * E)),
            "b_in": rnd((L, 1, 3 * E)),
            "w_out_t": rnd_bf16((L, E, E)),
            "b_out": rnd((L, 1, E)),
            "ln1_g": jnp.ones((L, 1, E), jnp.float32),
            "ln1_b": jnp.zeros((L, 1, E), jnp.float32),
            "w1_t": rnd_bf16((L, E, M)),
            "b1": rnd((L, 1, M)),
            "w2_t": rnd_bf16((L, M, E)),
            "b2": rnd((L, 1, E)),
            "ln2_g": jnp.ones((L, 1, E), jnp.float32),
            "ln2_b": jnp.zeros((L, 1, E), jnp.float32),
        },
        "head": {
            "w1_t": rnd_bf16((2 * E, M)),
            "b1": rnd((1, M)),
            "w2_t": rnd_bf16((M, num_classes)),
            "b2": rnd((1, num_classes)),
        },
    }


# ------------------------------ pure-JAX reference ---------------------------

def reference_forward(x_large, x_small, params, num_heads):
    blocks = params["blocks"]
    L = blocks["w_in_t"].shape[0]
    up = lambda a: a.astype(jnp.float32)   # reference in f32 on the bf16-rounded weights

    def patch(x, w, b, cls):
        B, C, H, W = x.shape
        E = w.shape[0]
        t = x.reshape(B, C, H * W).transpose(0, 2, 1) @ w.reshape(E, C).T + b
        return jnp.concatenate([jnp.broadcast_to(cls, (B, 1, E)), t], axis=1)

    def ln(t, g, bb):
        mu = t.mean(-1, keepdims=True)
        var = ((t - mu) ** 2).mean(-1, keepdims=True)
        return (t - mu) / jnp.sqrt(var + LN_EPS) * g + bb

    def layer(x, l):
        B, S, E = x.shape
        D = E // num_heads
        qkv = x @ up(blocks["w_in_t"][l]) + blocks["b_in"][l]
        q, k, v = qkv[..., :E], qkv[..., E:2 * E], qkv[..., 2 * E:]

        def split(t):
            return t.reshape(B, S, num_heads, D).transpose(0, 2, 1, 3)

        q, k, v = split(q), split(k), split(v)
        s = jnp.einsum("bhqd,bhkd->bhqk", q, k) / math.sqrt(D)
        a = jax.nn.softmax(s, axis=-1)
        o = jnp.einsum("bhqk,bhkd->bhqd", a, v)
        o = o.transpose(0, 2, 1, 3).reshape(B, S, E)
        attn = o @ up(blocks["w_out_t"][l]) + blocks["b_out"][l]
        x = ln(x + attn, blocks["ln1_g"][l], blocks["ln1_b"][l])
        h = _gelu_tanh(x @ up(blocks["w1_t"][l]) + blocks["b1"][l])
        mlp = h @ up(blocks["w2_t"][l]) + blocks["b2"][l]
        return ln(x + mlp, blocks["ln2_g"][l], blocks["ln2_b"][l])

    def stack(x):
        for l in range(L):
            x = layer(x, l)
        return x

    xl = stack(patch(x_large, params["patch_large"]["w"],
                     params["patch_large"]["b"], params["cls_large"]))
    xs = stack(patch(x_small, params["patch_small"]["w"],
                     params["patch_small"]["b"], params["cls_small"]))
    feat = jnp.concatenate([xl.mean(1), xs.mean(1)], axis=-1)
    h = _gelu_tanh(feat @ up(params["head"]["w1_t"]) + params["head"]["b1"])
    return h @ up(params["head"]["w2_t"]) + params["head"]["b2"]


# ----------------------------------- main ------------------------------------

if __name__ == "__main__":
    B = 2
    in_ch_large, in_ch_small = 3, 4
    H_large = W_large = 8            # 64 patches + cls -> S_large = 65 (padded to 72)
    H_small = W_small = 4            # 16 patches + cls -> S_small = 17 (padded to 72)
    embed_dim, num_heads, mlp_dim = 32, 4, 64
    num_layers, num_classes = 2, 10

    key = jax.random.PRNGKey(0)
    k_xl, k_xs, k_p = jax.random.split(key, 3)
    x_large = jax.random.normal(k_xl, (B, in_ch_large, H_large, W_large), jnp.float32)
    x_small = jax.random.normal(k_xs, (B, in_ch_small, H_small, W_small), jnp.float32)
    params = init_params(k_p, in_ch_large=in_ch_large, in_ch_small=in_ch_small,
                         embed_dim=embed_dim, num_heads=num_heads,
                         num_classes=num_classes, num_layers=num_layers,
                         mlp_dim=mlp_dim)

    logits = cross_vit_forward(x_large, x_small, params, num_heads)
    logits = jax.block_until_ready(logits)

    ref = reference_forward(x_large, x_small, params, num_heads)
    assert logits.shape == (B, num_classes)
    max_diff = float(jnp.max(jnp.abs(logits - ref)))
    # tolerance covers bf16 MXU operands + approx-reciprocal softmax denominator
    assert jnp.allclose(logits, ref, atol=2e-2, rtol=2e-2), (
        f"mismatch: max abs diff {max_diff}")
    print("KERNEL_OK")
</pallas_src>

<mosaic_0001>
module attributes {stable_mosaic.version = 11 : i64} {
  func.func @_prep_kernel(%arg0: i32, %arg1: memref<1x64x3xf32, #tpu.memory_space<vmem>>, %arg2: memref<1x16x4xf32, #tpu.memory_space<vmem>>, %arg3: memref<3x32xf32, #tpu.memory_space<vmem>>, %arg4: memref<1x32xf32, #tpu.memory_space<vmem>>, %arg5: memref<1x32xf32, #tpu.memory_space<vmem>>, %arg6: memref<4x32xf32, #tpu.memory_space<vmem>>, %arg7: memref<1x32xf32, #tpu.memory_space<vmem>>, %arg8: memref<1x32xf32, #tpu.memory_space<vmem>>, %arg9: memref<1x72x32xf32, #tpu.memory_space<vmem>>, %arg10: memref<1x72x32xf32, #tpu.memory_space<vmem>>) attributes {dimension_semantics = [#tpu.dimension_semantics<parallel>], iteration_bounds = array<i64: 2>, scalar_prefetch = 0 : i64, scratch_operands = 0 : i64, tpu.core_type = #tpu.core_type<tc>, window_params = [{transform_indices = @transform_0, window_bounds = array<i64: 1, 64, 3>}, {transform_indices = @transform_1, window_bounds = array<i64: 1, 16, 4>}, {pipeline_mode = #tpu.pipeline_mode<synchronous>, transform_indices = @transform_2, window_bounds = array<i64: 3, 32>}, {pipeline_mode = #tpu.pipeline_mode<synchronous>, transform_indices = @transform_3, window_bounds = array<i64: 1, 32>}, {pipeline_mode = #tpu.pipeline_mode<synchronous>, transform_indices = @transform_4, window_bounds = array<i64: 1, 32>}, {pipeline_mode = #tpu.pipeline_mode<synchronous>, transform_indices = @transform_5, window_bounds = array<i64: 4, 32>}, {pipeline_mode = #tpu.pipeline_mode<synchronous>, transform_indices = @transform_6, window_bounds = array<i64: 1, 32>}, {pipeline_mode = #tpu.pipeline_mode<synchronous>, transform_indices = @transform_7, window_bounds = array<i64: 1, 32>}, {transform_indices = @transform_8, window_bounds = array<i64: 1, 72, 32>}, {transform_indices = @transform_9, window_bounds = array<i64: 1, 72, 32>}]} {
    %c0 = arith.constant 0 : index
    %c0_0 = arith.constant 0 : index
    %c0_1 = arith.constant 0 : index
    %0 = vector.load %arg1[%c0, %c0_0, %c0_1] : memref<1x64x3xf32, #tpu.memory_space<vmem>>, vector<1x64x3xf32>
    %1 = vector.shape_cast %0 : vector<1x64x3xf32> to vector<64x3xf32>
    %c0_2 = arith.constant 0 : index
    %c0_3 = arith.constant 0 : index
    %2 = vector.load %arg3[%c0_2, %c0_3] : memref<3x32xf32, #tpu.memory_space<vmem>>, vector<3x32xf32>
    %c0_4 = arith.constant 0 : index
    %c0_5 = arith.constant 0 : index
    %3 = vector.load %arg4[%c0_4, %c0_5] : memref<1x32xf32, #tpu.memory_space<vmem>>, vector<1x32xf32>
    %c0_6 = arith.constant 0 : index
    %c0_7 = arith.constant 0 : index
    %4 = vector.load %arg5[%c0_6, %c0_7] : memref<1x32xf32, #tpu.memory_space<vmem>>, vector<1x32xf32>
    %cst = arith.constant dense<0.000000e+00> : vector<64x32xf32>
    %5 = tpu.matmul %1, %2, %cst {dimension_numbers = #tpu.dot_dimension_numbers<[1], [0], [0], [1], [0, 0, 1, 1], [], []>} : vector<64x3xf32>, vector<3x32xf32>, vector<64x32xf32> -> vector<64x32xf32>
    %6 = vector.broadcast %3 : vector<1x32xf32> to vector<64x32xf32>
    %7 = arith.addf %5, %6 : vector<64x32xf32>
    %cst_8 = arith.constant 0.000000e+00 : f32
    %8 = vector.broadcast %cst_8 : f32 to vector<7x32xf32>
    %9 = tpu.concatenate %4, %7, %8 in 0 : vector<1x32xf32>, vector<64x32xf32>, vector<7x32xf32> -> vector<72x32xf32>
    %c0_9 = arith.constant 0 : index
    %c0_10 = arith.constant 0 : index
    %c0_11 = arith.constant 0 : index
    %10 = vector.load %arg9[%c0_9, %c0_10, %c0_11] : memref<1x72x32xf32, #tpu.memory_space<vmem>>, vector<1x72x32xf32>
    %11 = vector.shape_cast %10 : vector<1x72x32xf32> to vector<72x32xf32>
    %12 = vector.shape_cast %9 : vector<72x32xf32> to vector<1x72x32xf32>
    tpu.vector_store %arg9[%c0_9, %c0_10, %c0_11], %12 {strides = array<i32>} : memref<1x72x32xf32, #tpu.memory_space<vmem>>, vector<1x72x32xf32>,
    %c0_12 = arith.constant 0 : index
    %c0_13 = arith.constant 0 : index
    %c0_14 = arith.constant 0 : index
    %13 = vector.load %arg2[%c0_12, %c0_13, %c0_14] : memref<1x16x4xf32, #tpu.memory_space<vmem>>, vector<1x16x4xf32>
    %14 = vector.shape_cast %13 : vector<1x16x4xf32> to vector<16x4xf32>
    %c0_15 = arith.constant 0 : index
    %c0_16 = arith.constant 0 : index
    %15 = vector.load %arg6[%c0_15, %c0_16] : memref<4x32xf32, #tpu.memory_space<vmem>>, vector<4x32xf32>
    %c0_17 = arith.constant 0 : index
    %c0_18 = arith.constant 0 : index
    %16 = vector.load %arg7[%c0_17, %c0_18] : memref<1x32xf32, #tpu.memory_space<vmem>>, vector<1x32xf32>
    %c0_19 = arith.constant 0 : index
    %c0_20 = arith.constant 0 : index
    %17 = vector.load %arg8[%c0_19, %c0_20] : memref<1x32xf32, #tpu.memory_space<vmem>>, vector<1x32xf32>
    %cst_21 = arith.constant dense<0.000000e+00> : vector<16x32xf32>
    %18 = tpu.matmul %14, %15, %cst_21 {dimension_numbers = #tpu.dot_dimension_numbers<[1], [0], [0], [1], [0, 0, 1, 1], [], []>} : vector<16x4xf32>, vector<4x32xf32>, vector<16x32xf32> -> vector<16x32xf32>
    %19 = vector.broadcast %16 : vector<1x32xf32> to vector<16x32xf32>
    %20 = arith.addf %18, %19 : vector<16x32xf32>
    %cst_22 = arith.constant 0.000000e+00 : f32
    %21 = vector.broadcast %cst_22 : f32 to vector<55x32xf32>
    %22 = tpu.concatenate %17, %20, %21 in 0 : vector<1x32xf32>, vector<16x32xf32>, vector<55x32xf32> -> vector<72x32xf32>
    %c0_23 = arith.constant 0 : index
    %c0_24 = arith.constant 0 : index
    %c0_25 = arith.constant 0 : index
    %23 = vector.load %arg10[%c0_23, %c0_24, %c0_25] : memref<1x72x32xf32, #tpu.memory_space<vmem>>, vector<1x72x32xf32>
    %24 = vector.shape_cast %23 : vector<1x72x32xf32> to vector<72x32xf32>
    %25 = vector.shape_cast %22 : vector<72x32xf32> to vector<1x72x32xf32>
    tpu.vector_store %arg10[%c0_23, %c0_24, %c0_25], %25 {strides = array<i32>} : memref<1x72x32xf32, #tpu.memory_space<vmem>>, vector<1x72x32xf32>,
    return
  }
  func.func @transform_0(%arg0: i32) -> (i32, i32, i32) {
    %c0_i32 = arith.constant 0 : i32
    %c0_i32_0 = arith.constant 0 : i32
    %c0_i32_1 = arith.constant 0 : i32
    return %arg0, %c0_i32, %c0_i32_0 : i32, i32, i32
  }
  func.func @transform_1(%arg0: i32) -> (i32, i32, i32) {
    %c0_i32 = arith.constant 0 : i32
    %c0_i32_0 = arith.constant 0 : i32
    %c0_i32_1 = arith.constant 0 : i32
    return %arg0, %c0_i32, %c0_i32_0 : i32, i32, i32
  }
  func.func @transform_2(%arg0: i32) -> (i32, i32) {
    %c0_i32 = arith.constant 0 : i32
    %c0_i32_0 = arith.constant 0 : i32
    %c0_i32_1 = arith.constant 0 : i32
    return %c0_i32, %c0_i32_0 : i32, i32
  }
  func.func @transform_3(%arg0: i32) -> (i32, i32) {
    %c0_i32 = arith.constant 0 : i32
    %c0_i32_0 = arith.constant 0 : i32
    %c0_i32_1 = arith.constant 0 : i32
    return %c0_i32, %c0_i32_0 : i32, i32
  }
  func.func @transform_4(%arg0: i32) -> (i32, i32) {
    %c0_i32 = arith.constant 0 : i32
    %c0_i32_0 = arith.constant 0 : i32
    %c0_i32_1 = arith.constant 0 : i32
    return %c0_i32, %c0_i32_0 : i32, i32
  }
  func.func @transform_5(%arg0: i32) -> (i32, i32) {
    %c0_i32 = arith.constant 0 : i32
    %c0_i32_0 = arith.constant 0 : i32
    %c0_i32_1 = arith.constant 0 : i32
    return %c0_i32, %c0_i32_0 : i32, i32
  }
  func.func @transform_6(%arg0: i32) -> (i32, i32) {
    %c0_i32 = arith.constant 0 : i32
    %c0_i32_0 = arith.constant 0 : i32
    %c0_i32_1 = arith.constant 0 : i32
    return %c0_i32, %c0_i32_0 : i32, i32
  }
  func.func @transform_7(%arg0: i32) -> (i32, i32) {
    %c0_i32 = arith.constant 0 : i32
    %c0_i32_0 = arith.constant 0 : i32
    %c0_i32_1 = arith.constant 0 : i32
    return %c0_i32, %c0_i32_0 : i32, i32
  }
  func.func @transform_8(%arg0: i32) -> (i32, i32, i32) {
    %c0_i32 = arith.constant 0 : i32
    %c0_i32_0 = arith.constant 0 : i32
    %c0_i32_1 = arith.constant 0 : i32
    return %arg0, %c0_i32, %c0_i32_0 : i32, i32, i32
  }
  func.func @transform_9(%arg0: i32) -> (i32, i32, i32) {
    %c0_i32 = arith.constant 0 : i32
    %c0_i32_0 = arith.constant 0 : i32
    %c0_i32_1 = arith.constant 0 : i32
    return %arg0, %c0_i32, %c0_i32_0 : i32, i32, i32
  }
}

</mosaic_0001>

<llo_original>
// kernel: tpu_custom_call.1
$region0: #{tpu_custom_call.1}
  #allocation0 [shape = 'u32[]', space=smem, size = 0x4, offset = 0x4, fixed_abs, tag = 'smem constant byte address 0x4 - core index']
  #allocation1 [shape = 'u32[72,128]{1,0:T(1,128)}', space=vmem, size = 0x9000, scoped, tag = 'internal scratch']
  %s0 = inlined_call_operand.vmem [shape: f32[2,64,3], index: 0, kind: input, shape index: {}]
  %s1 = inlined_call_operand.vmem [shape: f32[2,16,4], index: 1, kind: input, shape index: {}]
  %s2 = inlined_call_operand.vmem [shape: f32[3,32], index: 2, kind: input, shape index: {}]
  %s3 = inlined_call_operand.vmem [shape: f32[1,32], index: 3, kind: input, shape index: {}]
  %s4 = inlined_call_operand.vmem [shape: f32[1,32], index: 4, kind: input, shape index: {}]
  %s5 = inlined_call_operand.vmem [shape: f32[4,32], index: 5, kind: input, shape index: {}]
  %s6 = inlined_call_operand.vmem [shape: f32[1,32], index: 6, kind: input, shape index: {}]
  %s7 = inlined_call_operand.vmem [shape: f32[1,32], index: 7, kind: input, shape index: {}]
  %s8 = inlined_call_operand.vmem [shape: f32[2,72,32], index: 8, kind: output, shape index: {0}]
  %s9 = inlined_call_operand.vmem [shape: f32[2,72,32], index: 9, kind: output, shape index: {1}]
  %10 = xla_tuple %s8, %s9
  %s11 = sld [smem:[#allocation0]]
  $region73: #{tpu_custom_call.1} parent=0
    _
  %s13 = ssub.s32 1, %s11
  %s14 = scalar_select 0, %s13, %s11
  loop: start=0, step=1, limit=4
  $region2: #{tpu_custom_call.1} parent=0 // loop_pre_header
    _
  $region3: #{tpu_custom_call.1} parent=0 // loop_header
    %s16 = sphi 0, %s20
    %p17 = scmp.ge.s32.totalorder %s16, 4
    %s26 = sphi 0, %s28
    %s29 = sphi 0, %s26
    %s30 = sphi 0, %s29
    %s46 = sphi 0, %s30
    %s52 = sphi 0, %s54
    %s55 = sphi 0, %s52
    %s56 = sphi 0, %s55
    %s72 = sphi 0, %s56
    %s76 = sphi 0, %s76
    %s78 = sphi 0, %s76
    %s79 = sphi 0, %s78
    %s93 = sphi 0, %s79
    %s97 = sphi 0, %s97
    %s99 = sphi 0, %s97
    %s100 = sphi 0, %s99
    %s114 = sphi 0, %s100
    %s118 = sphi 0, %s118
    %s120 = sphi 0, %s118
    %s121 = sphi 0, %s120
    %s135 = sphi 0, %s121
    %s139 = sphi 0, %s139
    %s141 = sphi 0, %s139
    %s142 = sphi 0, %s141
    %s156 = sphi 0, %s142
    %s160 = sphi 0, %s160
    %s162 = sphi 0, %s160
    %s163 = sphi 0, %s162
    %s177 = sphi 0, %s163
    %s181 = sphi 0, %s181
    %s183 = sphi 0, %s181
    %s184 = sphi 0, %s183
    %s198 = sphi 0, %s184
    %s204 = sphi 0, %s206
    %s207 = sphi 0, %s204
    %s208 = sphi 0, %s207
    %s224 = sphi 0, %s208
    %s230 = sphi 0, %s232
    %s233 = sphi 0, %s230
    %s234 = sphi 0, %s233
    %s250 = sphi 0, %s234
  $region4: #{tpu_custom_call.1} parent=0 // loop_header_branch
    %19 = sbr.rel (%p17) target = $region8
  $region5: #{tpu_custom_call.1} parent=0 // loop_body
    %s21 = ssub.s32 %s16, 1
    %s22 = ssub.s32 %s16, 2
    %s23 = sadd.s32 %s16, 1
    %s24 = ssub.s32 %s16, %s23
    %p25 = scmp.eq.s32.totalorder %s24, 0
    %s27 = sadd.s32 %s26, 1
    %s28 = scalar_select %p25, %s26, %s27
    %p31 = pneg %p25
    %p32 = scmp.eq.s32.totalorder %s16, 1
    %p33 = por %p31, %p32
    %p34 = scmp.ne.s32.totalorder %s26, %s29
    %p35 = scmp.eq.s32.totalorder %s16, 0
    %p36 = por %p34, %p35
    %p37 = scmp.ne.s32.totalorder %s26, %s29
    %p38 = scmp.eq.s32.totalorder %s21, 1
    %p39 = por %p37, %p38
    %p40 = scmp.ne.s32.totalorder %s29, %s30
    %p41 = scmp.eq.s32.totalorder %s21, 0
    %p42 = por %p40, %p41
    %p43 = scmp.ne.s32.totalorder %s29, %s30
    %p44 = scmp.eq.s32.totalorder %s22, 1
    %p45 = por %p43, %p44
    %p47 = scmp.ne.s32.totalorder %s30, %s46
    %p48 = scmp.eq.s32.totalorder %s22, 0
    %p49 = por %p47, %p48
    %s50 = ssub.s32 %s16, %s23
    %p51 = scmp.eq.s32.totalorder %s50, 0
    %s53 = sadd.s32 %s52, 1
    %s54 = scalar_select %p51, %s52, %s53
    %p57 = pneg %p51
    %p58 = scmp.eq.s32.totalorder %s16, 1
    %p59 = por %p57, %p58
    %p60 = scmp.ne.s32.totalorder %s52, %s55
    %p61 = scmp.eq.s32.totalorder %s16, 0
    %p62 = por %p60, %p61
    %p63 = scmp.ne.s32.totalorder %s52, %s55
    %p64 = scmp.eq.s32.totalorder %s21, 1
    %p65 = por %p63, %p64
    %p66 = scmp.ne.s32.totalorder %s55, %s56
    %p67 = scmp.eq.s32.totalorder %s21, 0
    %p68 = por %p66, %p67
    %p69 = scmp.ne.s32.totalorder %s55, %s56
    %p70 = scmp.eq.s32.totalorder %s22, 1
    %p71 = por %p69, %p70
    %p73 = scmp.ne.s32.totalorder %s56, %s72
    %p74 = scmp.eq.s32.totalorder %s22, 0
    %p75 = por %p73, %p74
    %s77 = sadd.s32 %s76, 1
    %p80 = scmp.eq.s32.totalorder %s16, 1
    %p81 = scmp.ne.s32.totalorder %s76, %s78
    %p82 = scmp.eq.s32.totalorder %s16, 0
    %p83 = por %p81, %p82
    %p84 = scmp.ne.s32.totalorder %s76, %s78
    %p85 = scmp.eq.s32.totalorder %s21, 1
    %p86 = por %p84, %p85
    %p87 = scmp.ne.s32.totalorder %s78, %s79
    %p88 = scmp.eq.s32.totalorder %s21, 0
    %p89 = por %p87, %p88
    %p90 = scmp.ne.s32.totalorder %s78, %s79
    %p91 = scmp.eq.s32.totalorder %s22, 1
    %p92 = por %p90, %p91
    %p94 = scmp.ne.s32.totalorder %s79, %s93
    %p95 = scmp.eq.s32.totalorder %s22, 0
    %p96 = por %p94, %p95
    %s98 = sadd.s32 %s97, 1
    %p101 = scmp.eq.s32.totalorder %s16, 1
    %p102 = scmp.ne.s32.totalorder %s97, %s99
    %p103 = scmp.eq.s32.totalorder %s16, 0
    %p104 = por %p102, %p103
    %p105 = scmp.ne.s32.totalorder %s97, %s99
    %p106 = scmp.eq.s32.totalorder %s21, 1
    %p107 = por %p105, %p106
    %p108 = scmp.ne.s32.totalorder %s99, %s100
    %p109 = scmp.eq.s32.totalorder %s21, 0
    %p110 = por %p108, %p109
    %p111 = scmp.ne.s32.totalorder %s99, %s100
    %p112 = scmp.eq.s32.totalorder %s22, 1
    %p113 = por %p111, %p112
    %p115 = scmp.ne.s32.totalorder %s100, %s114
    %p116 = scmp.eq.s32.totalorder %s22, 0
    %p117 = por %p115, %p116
    %s119 = sadd.s32 %s118, 1
    %p122 = scmp.eq.s32.totalorder %s16, 1
    %p123 = scmp.ne.s32.totalorder %s118, %s120
    %p124 = scmp.eq.s32.totalorder %s16, 0
    %p125 = por %p123, %p124
    %p126 = scmp.ne.s32.totalorder %s118, %s120
    %p127 = scmp.eq.s32.totalorder %s21, 1
    %p128 = por %p126, %p127
    %p129 = scmp.ne.s32.totalorder %s120, %s121
    %p130 = scmp.eq.s32.totalorder %s21, 0
    %p131 = por %p129, %p130
    %p132 = scmp.ne.s32.totalorder %s120, %s121
    %p133 = scmp.eq.s32.totalorder %s22, 1
    %p134 = por %p132, %p133
    %p136 = scmp.ne.s32.totalorder %s121, %s135
    %p137 = scmp.eq.s32.totalorder %s22, 0
    %p138 = por %p136, %p137
    %s140 = sadd.s32 %s139, 1
    %p143 = scmp.eq.s32.totalorder %s16, 1
    %p144 = scmp.ne.s32.totalorder %s139, %s141
    %p145 = scmp.eq.s32.totalorder %s16, 0
    %p146 = por %p144, %p145
    %p147 = scmp.ne.s32.totalorder %s139, %s141
    %p148 = scmp.eq.s32.totalorder %s21, 1
    %p149 = por %p147, %p148
    %p150 = scmp.ne.s32.totalorder %s141, %s142
    %p151 = scmp.eq.s32.totalorder %s21, 0
    %p152 = por %p150, %p151
    %p153 = scmp.ne.s32.totalorder %s141, %s142
    %p154 = scmp.eq.s32.totalorder %s22, 1
    %p155 = por %p153, %p154
    %p157 = scmp.ne.s32.totalorder %s142, %s156
    %p158 = scmp.eq.s32.totalorder %s22, 0
    %p159 = por %p157, %p158
    %s161 = sadd.s32 %s160, 1
    %p164 = scmp.eq.s32.totalorder %s16, 1
    %p165 = scmp.ne.s32.totalorder %s160, %s162
    %p166 = scmp.eq.s32.totalorder %s16, 0
    %p167 = por %p165, %p166
    %p168 = scmp.ne.s32.totalorder %s160, %s162
    %p169 = scmp.eq.s32.totalorder %s21, 1
    %p170 = por %p168, %p169
    %p171 = scmp.ne.s32.totalorder %s162, %s163
    %p172 = scmp.eq.s32.totalorder %s21, 0
    %p173 = por %p171, %p172
    %p174 = scmp.ne.s32.totalorder %s162, %s163
    %p175 = scmp.eq.s32.totalorder %s22, 1
    %p176 = por %p174, %p175
    %p178 = scmp.ne.s32.totalorder %s163, %s177
    %p179 = scmp.eq.s32.totalorder %s22, 0
    %p180 = por %p178, %p179
    %s182 = sadd.s32 %s181, 1
    %p185 = scmp.eq.s32.totalorder %s16, 1
    %p186 = scmp.ne.s32.totalorder %s181, %s183
    %p187 = scmp.eq.s32.totalorder %s16, 0
    %p188 = por %p186, %p187
    %p189 = scmp.ne.s32.totalorder %s181, %s183
    %p190 = scmp.eq.s32.totalorder %s21, 1
    %p191 = por %p189, %p190
    %p192 = scmp.ne.s32.totalorder %s183, %s184
    %p193 = scmp.eq.s32.totalorder %s21, 0
    %p194 = por %p192, %p193
    %p195 = scmp.ne.s32.totalorder %s183, %s184
    %p196 = scmp.eq.s32.totalorder %s22, 1
    %p197 = por %p195, %p196
    %p199 = scmp.ne.s32.totalorder %s184, %s198
    %p200 = scmp.eq.s32.totalorder %s22, 0
    %p201 = por %p199, %p200
    %s202 = ssub.s32 %s16, %s23
    %p203 = scmp.eq.s32.totalorder %s202, 0
    %s205 = sadd.s32 %s204, 1
    %s206 = scalar_select %p203, %s204, %s205
    %p209 = pneg %p203
    %p210 = scmp.eq.s32.totalorder %s16, 1
    %p211 = por %p209, %p210
    %p212 = scmp.ne.s32.totalorder %s204, %s207
    %p213 = scmp.eq.s32.totalorder %s16, 0
    %p214 = por %p212, %p213
    %p215 = scmp.ne.s32.totalorder %s204, %s207
    %p216 = scmp.eq.s32.totalorder %s21, 1
    %p217 = por %p215, %p216
    %p218 = scmp.ne.s32.totalorder %s207, %s208
    %p219 = scmp.eq.s32.totalorder %s21, 0
    %p220 = por %p218, %p219
    %p221 = scmp.ne.s32.totalorder %s207, %s208
    %p222 = scmp.eq.s32.totalorder %s22, 1
    %p223 = por %p221, %p222
    %p225 = scmp.ne.s32.totalorder %s208, %s224
    %p226 = scmp.eq.s32.totalorder %s22, 0
    %p227 = por %p225, %p226
    %s228 = ssub.s32 %s16, %s23
    %p229 = scmp.eq.s32.totalorder %s228, 0
    %s231 = sadd.s32 %s230, 1
    %s232 = scalar_select %p229, %s230, %s231
    %p235 = pneg %p229
    %p236 = scmp.eq.s32.totalorder %s16, 1
    %p237 = por %p235, %p236
    %p238 = scmp.ne.s32.totalorder %s230, %s233
    %p239 = scmp.eq.s32.totalorder %s16, 0
    %p240 = por %p238, %p239
    %p241 = scmp.ne.s32.totalorder %s230, %s233
    %p242 = scmp.eq.s32.totalorder %s21, 1
    %p243 = por %p241, %p242
    %p244 = scmp.ne.s32.totalorder %s233, %s234
    %p245 = scmp.eq.s32.totalorder %s21, 0
    %p246 = por %p244, %p245
    %p247 = scmp.ne.s32.totalorder %s233, %s234
    %p248 = scmp.eq.s32.totalorder %s22, 1
    %p249 = por %p247, %p248
    %p251 = scmp.ne.s32.totalorder %s234, %s250
    %p252 = scmp.eq.s32.totalorder %s22, 0
    %p253 = por %p251, %p252
    %p254 = scmp.le.s32.totalorder 1, %s16
    %p255 = scmp.lt.s32.totalorder %s16, 3
    %p256 = pnand %p254, %p255
    %p257 = pneg %p256
    // Predicated region
    $region9: #{tpu_custom_call.1} parent=5 // pred_check
      _
    $region10: #{tpu_custom_call.1} parent=5 // pred_check_branch
      %259 = sbr.rel (%p256) target = $region12
    $region11: #{tpu_custom_call.1} parent=5 // pred_region
      %s260 = ssub.s32 %s16, 1
      // Predicated region
      $region13: #{tpu_custom_call.1} parent=11 // pred_check
        %p261 = pneg %p89
      $region14: #{tpu_custom_call.1} parent=11 // pred_check_branch
        %263 = sbr.rel (%p261) target = $region16
      $region15: #{tpu_custom_call.1} parent=11 // pred_region
        _
      $region16: #{tpu_custom_call.1} parent=11 // pred_fallthru
        _
      // Predicated region
      $region17: #{tpu_custom_call.1} parent=11 // pred_check
        %p264 = pneg %p110
      $region18: #{tpu_custom_call.1} parent=11 // pred_check_branch
        %266 = sbr.rel (%p264) target = $region20
      $region19: #{tpu_custom_call.1} parent=11 // pred_region
        _
      $region20: #{tpu_custom_call.1} parent=11 // pred_fallthru
        _
      // Predicated region
      $region21: #{tpu_custom_call.1} parent=11 // pred_check
        %p267 = pneg %p131
      $region22: #{tpu_custom_call.1} parent=11 // pred_check_branch
        %269 = sbr.rel (%p267) target = $region24
      $region23: #{tpu_custom_call.1} parent=11 // pred_region
        _
      $region24: #{tpu_custom_call.1} parent=11 // pred_fallthru
        _
      // Predicated region
      $region25: #{tpu_custom_call.1} parent=11 // pred_check
        %p270 = pneg %p152
      $region26: #{tpu_custom_call.1} parent=11 // pred_check_branch
        %272 = sbr.rel (%p270) target = $region28
      $region27: #{tpu_custom_call.1} parent=11 // pred_region
        _
      $region28: #{tpu_custom_call.1} parent=11 // pred_fallthru
        _
      // Predicated region
      $region29: #{tpu_custom_call.1} parent=11 // pred_check
        %p273 = pneg %p173
      $region30: #{tpu_custom_call.1} parent=11 // pred_check_branch
        %275 = sbr.rel (%p273) target = $region32
      $region31: #{tpu_custom_call.1} parent=11 // pred_region
        _
      $region32: #{tpu_custom_call.1} parent=11 // pred_fallthru
        _
      // Predicated region
      $region33: #{tpu_custom_call.1} parent=11 // pred_check
        %p276 = pneg %p194
      $region34: #{tpu_custom_call.1} parent=11 // pred_check_branch
        %278 = sbr.rel (%p276) target = $region36
      $region35: #{tpu_custom_call.1} parent=11 // pred_region
        _
      $region36: #{tpu_custom_call.1} parent=11 // pred_fallthru
        _
    $region12: #{tpu_custom_call.1} parent=5 // pred_fallthru
      _
    %p279 = scmp.lt.s32.totalorder %s16, 2
    // Predicated region
    $region37: #{tpu_custom_call.1} parent=5 // pred_check
      %p280 = pneg %p279
    $region38: #{tpu_custom_call.1} parent=5 // pred_check_branch
      %282 = sbr.rel (%p280) target = $region40
    $region39: #{tpu_custom_call.1} parent=5 // pred_region
      // Predicated region
      $region41: #{tpu_custom_call.1} parent=39 // pred_check
        %p283 = pneg %p36
      $region42: #{tpu_custom_call.1} parent=39 // pred_check_branch
        %285 = sbr.rel (%p283) target = $region44
      $region43: #{tpu_custom_call.1} parent=39 // pred_region
        %p286 = scmp.lt.s32.totalorder %s16, 1
        %s287 = scalar_select %p286, %s16, 1
        %s288 = smul.addr %s287, 8
        %s289 = smul.addr %s288, 8
        %s290 = scalar_lea.vmem %s0, %s289
      $region44: #{tpu_custom_call.1} parent=39 // pred_fallthru
        _
      // Predicated region
      $region45: #{tpu_custom_call.1} parent=39 // pred_check
        %p291 = pneg %p62
      $region46: #{tpu_custom_call.1} parent=39 // pred_check_branch
        %293 = sbr.rel (%p291) target = $region48
      $region47: #{tpu_custom_call.1} parent=39 // pred_region
        %p294 = scmp.lt.s32.totalorder %s16, 1
        %s295 = scalar_select %p294, %s16, 1
        %s296 = smul.addr %s295, 2
        %s297 = smul.addr %s296, 8
        %s298 = scalar_lea.vmem %s1, %s297
      $region48: #{tpu_custom_call.1} parent=39 // pred_fallthru
        _
    $region40: #{tpu_custom_call.1} parent=5 // pred_fallthru
      _
    %p299 = scmp.le.s32.totalorder 1, %s16
    %p300 = scmp.lt.s32.totalorder %s16, 3
    %p301 = pnand %p299, %p300
    %p302 = pneg %p301
    // Predicated region
    $region49: #{tpu_custom_call.1} parent=5 // pred_check
      _
    $region50: #{tpu_custom_call.1} parent=5 // pred_check_branch
      %304 = sbr.rel (%p301) target = $region52
    $region51: #{tpu_custom_call.1} parent=5 // pred_region
      %s305 = ssub.s32 %s16, 1
      %p306 = scmp.lt.s32.totalorder %s21, 1
      %s307 = scalar_select %p306, %s21, 1
      %s308 = smul.addr %s307, 8
      %s309 = smul.addr %s308, 8
      %s310 = scalar_lea.vmem %s0, %s309
      %p311 = pneg %p42
      %p312 = pneg %p39
      %p313 = scmp.lt.s32.totalorder %s21, 1
      %s314 = scalar_select %p313, %s21, 1
      %s315 = smul.addr %s314, 2
      %s316 = smul.addr %s315, 8
      %s317 = scalar_lea.vmem %s1, %s316
      %p318 = pneg %p68
      %p319 = pneg %p65
      %p320 = pneg %p89
      %p321 = pneg %p86
      %p322 = pneg %p110
      %p323 = pneg %p107
      %p324 = pneg %p131
      %p325 = pneg %p128
      %p326 = pneg %p152
      %p327 = pneg %p149
      %p328 = pneg %p173
      %p329 = pneg %p170
      %p330 = pneg %p194
      %p331 = pneg %p191
      %p332 = pneg %p220
      %p333 = pneg %p217
      %p334 = scmp.lt.s32.totalorder %s21, 1
      %s335 = scalar_select %p334, %s21, 1
      %s336 = smul.addr %s335, 9
      %s337 = smul.addr %s336, 8
      %s338 = scalar_lea.vmem %s8, %s337
      %p339 = pneg %p246
      %p340 = pneg %p243
      %p341 = scmp.lt.s32.totalorder %s21, 1
      %s342 = scalar_select %p341, %s21, 1
      %s343 = smul.addr %s342, 9
      %s344 = smul.addr %s343, 8
      %s345 = scalar_lea.vmem %s9, %s344
      %p346 = scmp.lt.s32.totalorder %s21, 1
      %s347 = scalar_select %p346, %s21, 1
      %s348 = smul.addr %s347, 8
      %s349 = smul.addr %s348, 8
      %s350 = scalar_lea.vmem %s0, %s349
      %p351 = scmp.lt.s32.totalorder %s21, 1
      %s352 = scalar_select %p351, %s21, 1
      %s353 = smul.addr %s352, 2
      %s354 = smul.addr %s353, 8
      %s355 = scalar_lea.vmem %s1, %s354
      %p356 = scmp.lt.s32.totalorder %s21, 1
      %s357 = scalar_select %p356, %s21, 1
      %s358 = smul.addr %s357, 9
      %s359 = smul.addr %s358, 8
      %s360 = scalar_lea.vmem %s8, %s359
      %p361 = scmp.lt.s32.totalorder %s21, 1
      %s362 = scalar_select %p361, %s21, 1
      %s363 = smul.addr %s362, 9
      %s364 = smul.addr %s363, 8
      %s365 = scalar_lea.vmem %s9, %s364
      %v366 = vld [vmem:[%s350] sm:$0xff]
      %v367 = vld [vmem:[%s350 + $0x8] sm:$0xff]
      %v368 = vld [vmem:[%s350 + $0x10] sm:$0xff]
      %v369 = vld [vmem:[%s350 + $0x18] sm:$0xff]
      %v370 = vld [vmem:[%s350 + $0x20] sm:$0xff]
      %v371 = vld [vmem:[%s350 + $0x28] sm:$0xff]
      %v372 = vld [vmem:[%s350 + $0x30] sm:$0xff]
      %v373 = vld [vmem:[%s350 + $0x38] sm:$0xff]
      %v374 = vld [vmem:[%s2] sm:$0x7]
      %v375 = vld [vmem:[%s3] sm:$0x1]
      %v376 = vld [vmem:[%s4] sm:$0x1]
      %v378 = vperm.slane %v375, 0
      %vm380 = vcmask 23552
      %v382 = vsel %vm380, %v366, 0
      %v385 = vsel %vm380, %v367, 0
      %v388 = vsel %vm380, %v368, 0
      %v391 = vsel %vm380, %v369, 0
      %v394 = vsel %vm380, %v370, 0
      %v397 = vsel %vm380, %v371, 0
      %v400 = vsel %vm380, %v372, 0
      %v403 = vsel %vm380, %v373, 0
      %vm405 = vcmask 1042432
      %v407 = vsel %vm405, %v374, 0
      %409 = vmatpush.msra.mxu0 0.0
      %410 = vmatpush.msra.mxu0 0.0
      %411 = vmatpush.msra.mxu0 0.0
      %412 = vmatpush.msra.mxu0 0.0
      %413 = vmatpush.msra.mxu0 0.0
      %414 = vmatpush.msra.mxu0 0.0
      %415 = vmatpush.msra.mxu0 0.0
      %416 = vmatpush.msra.mxu0 0.0
      %417 = vmatpush.msra.mxu0 0.0
      %418 = vmatpush.msra.mxu0 0.0
      %419 = vmatpush.msra.mxu0 0.0
      %420 = vmatpush.msra.mxu0 0.0
      %421 = vmatpush.msra.mxu0 0.0
      %422 = vmatpush.msra.mxu0 0.0
      %423 = vmatpush.msra.mxu0 0.0
      %424 = vmatpush.msra.mxu0 %v407
      %425 = vmatmul.f32.gmra.mxu0 %v382
      %v426 = vpop.f32.mrf.mxu0
      %v427 = vadd.f32 %v378, %v426
      %428 = vmatmul.f32.gmra.mxu0 %v385
      %v429 = vpop.f32.mrf.mxu0
      %v430 = vadd.f32 %v378, %v429
      %431 = vmatmul.f32.gmra.mxu0 %v388
      %v432 = vpop.f32.mrf.mxu0
      %v433 = vadd.f32 %v378, %v432
      %434 = vmatmul.f32.gmra.mxu0 %v391
      %v435 = vpop.f32.mrf.mxu0
      %v436 = vadd.f32 %v378, %v435
      %437 = vmatmul.f32.gmra.mxu0 %v394
      %v438 = vpop.f32.mrf.mxu0
      %v439 = vadd.f32 %v378, %v438
      %440 = vmatmul.f32.gmra.mxu0 %v397
      %v441 = vpop.f32.mrf.mxu0
      %v442 = vadd.f32 %v378, %v441
      %443 = vmatmul.f32.gmra.mxu0 %v400
      %v444 = vpop.f32.mrf.mxu0
      %v445 = vadd.f32 %v378, %v444
      %446 = vmatmul.f32.gmra.mxu0 %v403
      %v447 = vpop.f32.mrf.mxu0
      %v448 = vadd.f32 %v378, %v447
      %449 = vdwg.mxu0
      %vm458 = vcmask 1040384
      %v459 = vrot.slane %v427, 7
      %v460 = vrot.slane %v430, 7
      %v461 = vsel %vm458, %v459, %v460
      %v462 = vrot.slane %v433, 7
      %v463 = vsel %vm458, %v460, %v462
      %v464 = vrot.slane %v436, 7
      %v465 = vsel %vm458, %v462, %v464
      %v466 = vrot.slane %v439, 7
      %v467 = vsel %vm458, %v464, %v466
      %v468 = vrot.slane %v442, 7
      %v469 = vsel %vm458, %v466, %v468
      %v470 = vrot.slane %v445, 7
      %v471 = vsel %vm458, %v468, %v470
      %v472 = vrot.slane %v448, 7
      %v473 = vsel %vm458, %v470, %v472
      %v483 = vsel %vm458, %v376, %v459
      %v484 = vsel %vm458, %v472, 0.0
      %vm485 = vcmask 261120
      %486 = vst.msk [vmem:[%s360] sm:$0xff] %vm485, %v483
      %487 = vst.msk [vmem:[%s360 + $0x8] sm:$0xff] %vm485, %v461
      %488 = vst.msk [vmem:[%s360 + $0x10] sm:$0xff] %vm485, %v463
      %489 = vst.msk [vmem:[%s360 + $0x18] sm:$0xff] %vm485, %v465
      %490 = vst.msk [vmem:[%s360 + $0x20] sm:$0xff] %vm485, %v467
      %491 = vst.msk [vmem:[%s360 + $0x28] sm:$0xff] %vm485, %v469
      %492 = vst.msk [vmem:[%s360 + $0x30] sm:$0xff] %vm485, %v471
      %493 = vst.msk [vmem:[%s360 + $0x38] sm:$0xff] %vm485, %v473
      %494 = vst.msk [vmem:[%s360 + $0x40] sm:$0xff] %vm485, %v484
      %v495 = vld [vmem:[%s355] sm:$0xff]
      %v496 = vld [vmem:[%s355 + $0x8] sm:$0xff]
      %v497 = vld [vmem:[%s5] sm:$0xf]
      %v498 = vld [vmem:[%s6] sm:$0x1]
      %v499 = vld [vmem:[%s7] sm:$0x1]
      %v501 = vperm.slane %v498, 0
      %vm503 = vcmask 31744
      %v505 = vsel %vm503, %v495, 0
      %v508 = vsel %vm503, %v496, 0
      %vm510 = vcmask 1043456
      %v512 = vsel %vm510, %v497, 0
      %514 = vmatpush.msra.mxu0 0.0
      %515 = vmatpush.msra.mxu0 0.0
      %516 = vmatpush.msra.mxu0 0.0
      %517 = vmatpush.msra.mxu0 0.0
      %518 = vmatpush.msra.mxu0 0.0
      %519 = vmatpush.msra.mxu0 0.0
      %520 = vmatpush.msra.mxu0 0.0
      %521 = vmatpush.msra.mxu0 0.0
      %522 = vmatpush.msra.mxu0 0.0
      %523 = vmatpush.msra.mxu0 0.0
      %524 = vmatpush.msra.mxu0 0.0
      %525 = vmatpush.msra.mxu0 0.0
      %526 = vmatpush.msra.mxu0 0.0
      %527 = vmatpush.msra.mxu0 0.0
      %528 = vmatpush.msra.mxu0 0.0
      %529 = vmatpush.msra.mxu0 %v512
      %530 = vmatmul.f32.gmra.mxu0 %v505
      %v531 = vpop.f32.mrf.mxu0
      %v532 = vadd.f32 %v501, %v531
      %533 = vmatmul.f32.gmra.mxu0 %v508
      %v534 = vpop.f32.mrf.mxu0
      %v535 = vadd.f32 %v501, %v534
      %536 = vdwg.mxu0
      %v539 = vrot.slane %v532, 7
      %v540 = vrot.slane %v535, 7
      %v541 = vsel %vm458, %v539, %v540
      %v545 = vsel %vm458, %v499, %v539
      %v546 = vsel %vm458, %v540, 0.0
      %547 = vst.msk [vmem:[%s365] sm:$0xff] %vm485, %v545
      %548 = vst.msk [vmem:[%s365 + $0x8] sm:$0xff] %vm485, %v541
      %549 = vst.msk [vmem:[%s365 + $0x10] sm:$0xff] %vm485, %v546
      %550 = vst.msk [vmem:[%s365 + $0x18] sm:$0xff] %vm485, 0.0
      %551 = vst.msk [vmem:[%s365 + $0x20] sm:$0xff] %vm485, 0.0
      %552 = vst.msk [vmem:[%s365 + $0x28] sm:$0xff] %vm485, 0.0
      %553 = vst.msk [vmem:[%s365 + $0x30] sm:$0xff] %vm485, 0.0
      %554 = vst.msk [vmem:[%s365 + $0x38] sm:$0xff] %vm485, 0.0
      %555 = vst.msk [vmem:[%s365 + $0x40] sm:$0xff] %vm485, 0.0
      %p556 = scmp.lt.s32.totalorder %s21, 1
      %s557 = scalar_select %p556, %s21, 1
      %s558 = smul.addr %s557, 9
      %s559 = smul.addr %s558, 8
      %s560 = scalar_lea.vmem %s8, %s559
      %p561 = scmp.lt.s32.totalorder %s21, 1
      %s562 = scalar_select %p561, %s21, 1
      %s563 = smul.addr %s562, 9
      %s564 = smul.addr %s563, 8
      %s565 = scalar_lea.vmem %s9, %s564
      // Predicated region
      $region53: #{tpu_custom_call.1} parent=51 // pred_check
        %p566 = pneg %p217
      $region54: #{tpu_custom_call.1} parent=51 // pred_check_branch
        %568 = sbr.rel (%p566) target = $region56
      $region55: #{tpu_custom_call.1} parent=51 // pred_region
        _
      $region56: #{tpu_custom_call.1} parent=51 // pred_fallthru
        _
      // Predicated region
      $region57: #{tpu_custom_call.1} parent=51 // pred_check
        %p569 = pneg %p243
      $region58: #{tpu_custom_call.1} parent=51 // pred_check_branch
        %571 = sbr.rel (%p569) target = $region60
      $region59: #{tpu_custom_call.1} parent=51 // pred_region
        _
      $region60: #{tpu_custom_call.1} parent=51 // pred_fallthru
        _
    $region52: #{tpu_custom_call.1} parent=5 // pred_fallthru
      _
    %p572 = scmp.le.s32.totalorder 2, %s16
    // Predicated region
    $region61: #{tpu_custom_call.1} parent=5 // pred_check
      %p573 = pneg %p572
    $region62: #{tpu_custom_call.1} parent=5 // pred_check_branch
      %575 = sbr.rel (%p573) target = $region64
    $region63: #{tpu_custom_call.1} parent=5 // pred_region
      %s576 = ssub.s32 %s16, 2
      // Predicated region
      $region65: #{tpu_custom_call.1} parent=63 // pred_check
        %p577 = pneg %p223
      $region66: #{tpu_custom_call.1} parent=63 // pred_check_branch
        %579 = sbr.rel (%p577) target = $region68
      $region67: #{tpu_custom_call.1} parent=63 // pred_region
        %p580 = scmp.lt.s32.totalorder %s22, 1
        %s581 = scalar_select %p580, %s22, 1
        %s582 = smul.addr %s581, 9
        %s583 = smul.addr %s582, 8
        %s584 = scalar_lea.vmem %s8, %s583
      $region68: #{tpu_custom_call.1} parent=63 // pred_fallthru
        _
      // Predicated region
      $region69: #{tpu_custom_call.1} parent=63 // pred_check
        %p585 = pneg %p249
      $region70: #{tpu_custom_call.1} parent=63 // pred_check_branch
        %587 = sbr.rel (%p585) target = $region72
      $region71: #{tpu_custom_call.1} parent=63 // pred_region
        %p588 = scmp.lt.s32.totalorder %s22, 1
        %s589 = scalar_select %p588, %s22, 1
        %s590 = smul.addr %s589, 9
        %s591 = smul.addr %s590, 8
        %s592 = scalar_lea.vmem %s9, %s591
      $region72: #{tpu_custom_call.1} parent=63 // pred_fallthru
        _
    $region64: #{tpu_custom_call.1} parent=5 // pred_fallthru
      _
  $region6: #{tpu_custom_call.1} parent=0 // loop_footer
    %s20 = sadd.s32 1, %s16
  $region7: #{tpu_custom_call.1} parent=0 // loop_footer_branch
    %15 = sbr.rel target = $region3
  $region8: #{tpu_custom_call.1} parent=0 // loop_exit
    _

</llo_original>
